<compile_context>
chip_gen: v7x
topology: tpu7x:2x2x1
jax: 0.10.0
libtpu: 0.0.40
codegen_flags: <defaults>
</compile_context>

<pallas_src>
import functools

import jax
import jax.numpy as jnp
from jax import lax
from jax.experimental import pallas as pl
from jax.experimental.pallas import tpu as pltpu

INPUT_DIM = 2
HIDDEN_DIM = 128
OUTPUT_DIM = 2


def generator_kernel(x_ref, w1t_ref, b1_ref, w2t_ref, b2_ref, o_ref, *,
                     chunk_b, nchunks):
    # Shapes (transposed layout, batch on the lane axis):
    #   x_ref  : (INPUT_DIM,  TB)
    #   w1t_ref: (HIDDEN_DIM, INPUT_DIM)   == W1^T
    #   b1_ref : (HIDDEN_DIM, 1)
    #   w2t_ref: (OUTPUT_DIM, HIDDEN_DIM)  == W2^T
    #   b2_ref : (OUTPUT_DIM, 1)
    #   o_ref  : (OUTPUT_DIM, TB)
    #
    # Hoist weight/bias loads (and per-column views) out of the chunk loop so
    # they are read / broadcast-prepared once per grid step.
    w1t = w1t_ref[...]
    w1_cols = [w1t[:, k:k + 1] for k in range(INPUT_DIM)]   # (HIDDEN_DIM, 1) each
    b1 = b1_ref[...]
    w2t = w2t_ref[...]
    b2 = b2_ref[...]

    def chunk_body(c, carry):
        start = pl.multiple_of(c * chunk_b, chunk_b)
        xc = x_ref[:, pl.ds(start, chunk_b)]                # (INPUT_DIM, chunk)

        # Layer 1: K = INPUT_DIM = 2 -> too small for the MXU, keep it on the
        # VPU as broadcast multiply-adds, statically unrolled over INPUT_DIM.
        # TODO(synk): if the bundle dump shows materialized (HIDDEN_DIM, chunk)
        # broadcast temporaries on the VALU, switch the xc row reads to
        # stride-0 sublane-broadcast loads (load/XLU slots have slack here).
        h = w1_cols[0] * xc[0:1, :]
        for k in range(1, INPUT_DIM):
            h = h + w1_cols[k] * xc[k:k + 1, :]
        h = jnp.maximum(h + b1, 0.0)                         # (HIDDEN_DIM, chunk)

        # Layer 2: K = 128 -> MXU, f32 accumulation.  h for this chunk stays
        # in vregs (<= 32 for chunk_b = 256), so no VMEM writeback of h.
        out = jnp.dot(w2t, h, preferred_element_type=jnp.float32) + b2
        o_ref[:, pl.ds(start, chunk_b)] = out.astype(o_ref.dtype)
        return carry

    # Unrolled inner loop: LLO scheduler sees the whole tile while the loop
    # structure bounds per-chunk live ranges (avoids spilling the vreg file).
    lax.fori_loop(0, nchunks, chunk_body, 0, unroll=True)


@functools.partial(
    jax.jit, static_argnames=("block_b", "x_is_transposed", "return_transposed"))
def generator_forward(x, w1, b1, w2, b2, *, block_b=4096,
                      x_is_transposed=False, return_transposed=False):
    """Forward pass of Linear(2,128) -> ReLU -> Linear(128,2).

    x : (B, INPUT_DIM), or (INPUT_DIM, B) if x_is_transposed=True.
    w1: (INPUT_DIM, HIDDEN_DIM);  b1: (HIDDEN_DIM,)
    w2: (HIDDEN_DIM, OUTPUT_DIM); b2: (OUTPUT_DIM,)
    Returns (B, OUTPUT_DIM), or (OUTPUT_DIM, B) if return_transposed=True
    (lets a consumer fuse away the final relayout / HBM pass).
    """
    if x_is_transposed:
        xt = x.astype(jnp.float32)                       # (INPUT_DIM, B)
    else:
        xt = x.T.astype(jnp.float32)                     # (INPUT_DIM, B)
    B = xt.shape[1]

    w1t = w1.T.astype(jnp.float32)                       # (HIDDEN_DIM, INPUT_DIM)
    b1c = b1.reshape(HIDDEN_DIM, 1).astype(jnp.float32)
    w2t = w2.T.astype(jnp.float32)                       # (OUTPUT_DIM, HIDDEN_DIM)
    b2c = b2.reshape(OUTPUT_DIM, 1).astype(jnp.float32)

    # Batch tile sits on the lane axis: clamp it to a multiple of 128 (>=128)
    # and pad the batch so it tiles evenly into lane-dense blocks.
    padded_b = pl.cdiv(B, 128) * 128
    tb = max(128, (min(block_b, padded_b) // 128) * 128)
    padded_b = pl.cdiv(padded_b, tb) * tb
    if padded_b != B:
        xt = jnp.pad(xt, ((0, 0), (0, padded_b - B)))

    # In-kernel fusion chunk: layer1 + ReLU + layer2 per 256-lane slice so the
    # hidden activation never round-trips through VMEM.
    chunk_b = 256 if tb % 256 == 0 else 128
    nchunks = tb // chunk_b

    grid = (padded_b // tb,)
    flops = 2 * padded_b * (INPUT_DIM * HIDDEN_DIM + HIDDEN_DIM * OUTPUT_DIM)
    bytes_accessed = 4 * (xt.size + w1t.size + b1c.size + w2t.size + b2c.size
                          + OUTPUT_DIM * padded_b)

    kernel = functools.partial(generator_kernel, chunk_b=chunk_b, nchunks=nchunks)

    out_t = pl.pallas_call(
        kernel,
        out_shape=jax.ShapeDtypeStruct((OUTPUT_DIM, padded_b), jnp.float32),
        grid_spec=pltpu.PrefetchScalarGridSpec(
            num_scalar_prefetch=0,
            grid=grid,
            in_specs=[
                # Activations: tiled along the batch (lane) axis.
                pl.BlockSpec((INPUT_DIM, tb), lambda i: (0, i)),
                # Weights / biases: constant index_map -> VMEM-resident.
                pl.BlockSpec((HIDDEN_DIM, INPUT_DIM), lambda i: (0, 0)),
                pl.BlockSpec((HIDDEN_DIM, 1), lambda i: (0, 0)),
                pl.BlockSpec((OUTPUT_DIM, HIDDEN_DIM), lambda i: (0, 0)),
                pl.BlockSpec((OUTPUT_DIM, 1), lambda i: (0, 0)),
            ],
            out_specs=pl.BlockSpec((OUTPUT_DIM, tb), lambda i: (0, i)),
        ),
        # TODO(synk): on v7x, confirm via xprof that both TensorCores are busy;
        # if one is idle, switch this axis to pltpu.CORE_PARALLEL ("parallel"
        # kept here as the portable choice across v5e/v6e/v7x).
        compiler_params=pltpu.CompilerParams(
            dimension_semantics=("parallel",)),
        cost_estimate=pl.CostEstimate(
            flops=flops, transcendentals=0, bytes_accessed=bytes_accessed),
    )(xt, w1t, b1c, w2t, b2c)

    if return_transposed:
        return out_t[:, :B]
    return out_t[:, :B].T


def init_params(key):
    # Deterministic init mimicking PyTorch's default Linear init:
    # uniform(-1/sqrt(fan_in), 1/sqrt(fan_in)) for weights and biases.
    k1, k2, k3, k4 = jax.random.split(key, 4)
    bound1 = 1.0 / jnp.sqrt(INPUT_DIM)
    bound2 = 1.0 / jnp.sqrt(HIDDEN_DIM)
    w1 = jax.random.uniform(k1, (INPUT_DIM, HIDDEN_DIM), jnp.float32, -bound1, bound1)
    b1 = jax.random.uniform(k2, (HIDDEN_DIM,), jnp.float32, -bound1, bound1)
    w2 = jax.random.uniform(k3, (HIDDEN_DIM, OUTPUT_DIM), jnp.float32, -bound2, bound2)
    b2 = jax.random.uniform(k4, (OUTPUT_DIM,), jnp.float32, -bound2, bound2)
    return w1, b1, w2, b2


if __name__ == "__main__":
    key = jax.random.PRNGKey(0)
    kx, kp = jax.random.split(key)
    w1, b1, w2, b2 = init_params(kp)

    # Small PyTorch-style batch.
    batch = 8
    x = jax.random.normal(kx, (batch, INPUT_DIM), jnp.float32)
    out = jax.block_until_ready(generator_forward(x, w1, b1, w2, b2))

    # A batch that exercises multiple grid steps and multiple in-kernel chunks.
    big = 4736
    xb = jax.random.normal(kx, (big, INPUT_DIM), jnp.float32)
    out_big = jax.block_until_ready(generator_forward(xb, w1, b1, w2, b2))

    # Reference in plain JAX (same math as the PyTorch module).
    ref = jnp.maximum(x @ w1 + b1, 0.0) @ w2 + b2
    ref_big = jnp.maximum(xb @ w1 + b1, 0.0) @ w2 + b2
    assert out.shape == (batch, OUTPUT_DIM)
    assert out_big.shape == (big, OUTPUT_DIM)
    assert jnp.allclose(out, ref, atol=1e-5, rtol=1e-5), \
        float(jnp.max(jnp.abs(out - ref)))
    assert jnp.allclose(out_big, ref_big, atol=1e-5, rtol=1e-5), \
        float(jnp.max(jnp.abs(out_big - ref_big)))
    print("KERNEL_OK")
</pallas_src>

<mosaic_0001>
module attributes {stable_mosaic.version = 11 : i64} {
  func.func @generator_kernel(%arg0: i32, %arg1: memref<2x128xf32, #tpu.memory_space<vmem>>, %arg2: memref<128x2xf32, #tpu.memory_space<vmem>>, %arg3: memref<128x1xf32, #tpu.memory_space<vmem>>, %arg4: memref<2x128xf32, #tpu.memory_space<vmem>>, %arg5: memref<2x1xf32, #tpu.memory_space<vmem>>, %arg6: memref<2x128xf32, #tpu.memory_space<vmem>>) attributes {dimension_semantics = [#tpu.dimension_semantics<parallel>], iteration_bounds = array<i64: 1>, scalar_prefetch = 0 : i64, scratch_operands = 0 : i64, tpu.core_type = #tpu.core_type<tc>, window_params = [{transform_indices = @transform_0, window_bounds = array<i64: 2, 128>}, {pipeline_mode = #tpu.pipeline_mode<synchronous>, transform_indices = @transform_1, window_bounds = array<i64: 128, 2>}, {pipeline_mode = #tpu.pipeline_mode<synchronous>, transform_indices = @transform_2, window_bounds = array<i64: 128, 1>}, {pipeline_mode = #tpu.pipeline_mode<synchronous>, transform_indices = @transform_3, window_bounds = array<i64: 2, 128>}, {pipeline_mode = #tpu.pipeline_mode<synchronous>, transform_indices = @transform_4, window_bounds = array<i64: 2, 1>}, {transform_indices = @transform_5, window_bounds = array<i64: 2, 128>}]} {
    %c0 = arith.constant 0 : index
    %c0_0 = arith.constant 0 : index
    %0 = vector.load %arg2[%c0, %c0_0] : memref<128x2xf32, #tpu.memory_space<vmem>>, vector<128x2xf32>
    %1 = vector.extract_strided_slice %0 {offsets = [0, 0], sizes = [128, 1], strides = [1, 1]} : vector<128x2xf32> to vector<128x1xf32>
    %2 = vector.extract_strided_slice %0 {offsets = [0, 1], sizes = [128, 1], strides = [1, 1]} : vector<128x2xf32> to vector<128x1xf32>
    %c0_1 = arith.constant 0 : index
    %c0_2 = arith.constant 0 : index
    %3 = vector.load %arg3[%c0_1, %c0_2] : memref<128x1xf32, #tpu.memory_space<vmem>>, vector<128x1xf32>
    %c0_3 = arith.constant 0 : index
    %c0_4 = arith.constant 0 : index
    %4 = vector.load %arg4[%c0_3, %c0_4] : memref<2x128xf32, #tpu.memory_space<vmem>>, vector<2x128xf32>
    %c0_5 = arith.constant 0 : index
    %c0_6 = arith.constant 0 : index
    %5 = vector.load %arg5[%c0_5, %c0_6] : memref<2x1xf32, #tpu.memory_space<vmem>>, vector<2x1xf32>
    %c0_i32 = arith.constant 0 : i32
    %c128_i32 = arith.constant 128 : i32
    %6 = arith.muli %c0_i32, %c128_i32 : i32
    %7 = tpu.assume_multiple %6, 128 : i32
    %c0_7 = arith.constant 0 : index
    %8 = arith.index_cast %7 : i32 to index
    %9 = vector.load %arg1[%c0_7, %8] : memref<2x128xf32, #tpu.memory_space<vmem>>, vector<2x128xf32>
    %10 = vector.extract_strided_slice %9 {offsets = [0, 0], sizes = [1, 128], strides = [1, 1]} : vector<2x128xf32> to vector<1x128xf32>
    %11 = vector.broadcast %1 : vector<128x1xf32> to vector<128x128xf32>
    %12 = vector.broadcast %10 : vector<1x128xf32> to vector<128x128xf32>
    %13 = arith.mulf %11, %12 : vector<128x128xf32>
    %14 = vector.extract_strided_slice %9 {offsets = [1, 0], sizes = [1, 128], strides = [1, 1]} : vector<2x128xf32> to vector<1x128xf32>
    %15 = vector.broadcast %2 : vector<128x1xf32> to vector<128x128xf32>
    %16 = vector.broadcast %14 : vector<1x128xf32> to vector<128x128xf32>
    %17 = arith.mulf %15, %16 : vector<128x128xf32>
    %18 = arith.addf %13, %17 : vector<128x128xf32>
    %19 = vector.broadcast %3 : vector<128x1xf32> to vector<128x128xf32>
    %20 = arith.addf %18, %19 : vector<128x128xf32>
    %cst = arith.constant 0.000000e+00 : f32
    %21 = vector.broadcast %cst : f32 to vector<128x128xf32>
    %22 = arith.maximumf %20, %21 : vector<128x128xf32>
    %cst_8 = arith.constant dense<0.000000e+00> : vector<2x128xf32>
    %23 = tpu.matmul %4, %22, %cst_8 {dimension_numbers = #tpu.dot_dimension_numbers<[1], [0], [0], [1], [0, 0, 1, 1], [], []>} : vector<2x128xf32>, vector<128x128xf32>, vector<2x128xf32> -> vector<2x128xf32>
    %24 = vector.broadcast %5 : vector<2x1xf32> to vector<2x128xf32>
    %25 = arith.addf %23, %24 : vector<2x128xf32>
    %c0_9 = arith.constant 0 : index
    %26 = arith.index_cast %7 : i32 to index
    %27 = vector.load %arg6[%c0_9, %26] : memref<2x128xf32, #tpu.memory_space<vmem>>, vector<2x128xf32>
    tpu.vector_store %arg6[%c0_9, %26], %25 {strides = array<i32>} : memref<2x128xf32, #tpu.memory_space<vmem>>, vector<2x128xf32>,
    %c1_i32 = arith.constant 1 : i32
    return
  }
  func.func @transform_0(%arg0: i32) -> (i32, i32) {
    %c0_i32 = arith.constant 0 : i32
    %c0_i32_0 = arith.constant 0 : i32
    return %c0_i32, %arg0 : i32, i32
  }
  func.func @transform_1(%arg0: i32) -> (i32, i32) {
    %c0_i32 = arith.constant 0 : i32
    %c0_i32_0 = arith.constant 0 : i32
    %c0_i32_1 = arith.constant 0 : i32
    return %c0_i32, %c0_i32_0 : i32, i32
  }
  func.func @transform_2(%arg0: i32) -> (i32, i32) {
    %c0_i32 = arith.constant 0 : i32
    %c0_i32_0 = arith.constant 0 : i32
    %c0_i32_1 = arith.constant 0 : i32
    return %c0_i32, %c0_i32_0 : i32, i32
  }
  func.func @transform_3(%arg0: i32) -> (i32, i32) {
    %c0_i32 = arith.constant 0 : i32
    %c0_i32_0 = arith.constant 0 : i32
    %c0_i32_1 = arith.constant 0 : i32
    return %c0_i32, %c0_i32_0 : i32, i32
  }
  func.func @transform_4(%arg0: i32) -> (i32, i32) {
    %c0_i32 = arith.constant 0 : i32
    %c0_i32_0 = arith.constant 0 : i32
    %c0_i32_1 = arith.constant 0 : i32
    return %c0_i32, %c0_i32_0 : i32, i32
  }
  func.func @transform_5(%arg0: i32) -> (i32, i32) {
    %c0_i32 = arith.constant 0 : i32
    %c0_i32_0 = arith.constant 0 : i32
    return %c0_i32, %arg0 : i32, i32
  }
}

</mosaic_0001>

<llo_original>
// kernel: generator_forward.1
$region0: #{generator_forward.1}
  #allocation0 [shape = 'u32[]', space=smem, size = 0x4, offset = 0x4, fixed_abs, tag = 'smem constant byte address 0x4 - core index']
  #allocation1 [shape = 'u32[144,128]{1,0:T(1,128)}', space=vmem, size = 0x12000, scoped, tag = 'internal scratch']
  %s0 = inlined_call_operand.vmem [shape: f32[2,128], index: 0, kind: input, shape index: {}]
  %s1 = inlined_call_operand.vmem [shape: f32[128,2], index: 1, kind: input, shape index: {}]
  %s2 = inlined_call_operand.vmem [shape: f32[128,1], index: 2, kind: input, shape index: {}]
  %s3 = inlined_call_operand.vmem [shape: f32[2,128], index: 3, kind: input, shape index: {}]
  %s4 = inlined_call_operand.vmem [shape: f32[2,1], index: 4, kind: input, shape index: {}]
  %s5 = inlined_call_operand.vmem [shape: f32[2,128], index: 5, kind: output, shape index: {}]
  %s6 = sld [smem:[#allocation0]]
  $region30: #{generator_forward.1} parent=0
    _
  %s8 = ssub.s32 1, %s6
  %s9 = scalar_select 0, %s8, %s6
  // Predicated region
  $region2: #{generator_forward.1} parent=0 // pred_check
    _
  $region3: #{generator_forward.1} parent=0 // pred_check_branch
    %11 = sbr.rel (0) target = $region5
  $region4: #{generator_forward.1} parent=0 // pred_region
    _
  $region5: #{generator_forward.1} parent=0 // pred_fallthru
    _
  // Predicated region
  $region6: #{generator_forward.1} parent=0 // pred_check
    _
  $region7: #{generator_forward.1} parent=0 // pred_check_branch
    %13 = sbr.rel (0) target = $region9
  $region8: #{generator_forward.1} parent=0 // pred_region
    _
  $region9: #{generator_forward.1} parent=0 // pred_fallthru
    _
  // Predicated region
  $region10: #{generator_forward.1} parent=0 // pred_check
    _
  $region11: #{generator_forward.1} parent=0 // pred_check_branch
    %15 = sbr.rel (0) target = $region13
  $region12: #{generator_forward.1} parent=0 // pred_region
    _
  $region13: #{generator_forward.1} parent=0 // pred_fallthru
    _
  // Predicated region
  $region14: #{generator_forward.1} parent=0 // pred_check
    _
  $region15: #{generator_forward.1} parent=0 // pred_check_branch
    %17 = sbr.rel (0) target = $region17
  $region16: #{generator_forward.1} parent=0 // pred_region
    _
  $region17: #{generator_forward.1} parent=0 // pred_fallthru
    _
  // Predicated region
  $region18: #{generator_forward.1} parent=0 // pred_check
    _
  $region19: #{generator_forward.1} parent=0 // pred_check_branch
    %19 = sbr.rel (0) target = $region21
  $region20: #{generator_forward.1} parent=0 // pred_region
    _
  $region21: #{generator_forward.1} parent=0 // pred_fallthru
    _
  %v20 = vld [vmem:[%s1] sm:$0xff]
  %v21 = vld [vmem:[%s1 + $0x8] sm:$0xff]
  %v22 = vld [vmem:[%s1 + $0x10] sm:$0xff]
  %v23 = vld [vmem:[%s1 + $0x18] sm:$0xff]
  %v24 = vld [vmem:[%s1 + $0x20] sm:$0xff]
  %v25 = vld [vmem:[%s1 + $0x28] sm:$0xff]
  %v26 = vld [vmem:[%s1 + $0x30] sm:$0xff]
  %v27 = vld [vmem:[%s1 + $0x38] sm:$0xff]
  %v28 = vld [vmem:[%s1 + $0x40] sm:$0xff]
  %v29 = vld [vmem:[%s1 + $0x48] sm:$0xff]
  %v30 = vld [vmem:[%s1 + $0x50] sm:$0xff]
  %v31 = vld [vmem:[%s1 + $0x58] sm:$0xff]
  %v32 = vld [vmem:[%s1 + $0x60] sm:$0xff]
  %v33 = vld [vmem:[%s1 + $0x68] sm:$0xff]
  %v34 = vld [vmem:[%s1 + $0x70] sm:$0xff]
  %v35 = vld [vmem:[%s1 + $0x78] sm:$0xff]
  %v36 = vld [vmem:[%s2] sm:$0xff]
  %v37 = vld [vmem:[%s2 + $0x8] sm:$0xff]
  %v38 = vld [vmem:[%s2 + $0x10] sm:$0xff]
  %v39 = vld [vmem:[%s2 + $0x18] sm:$0xff]
  %v40 = vld [vmem:[%s2 + $0x20] sm:$0xff]
  %v41 = vld [vmem:[%s2 + $0x28] sm:$0xff]
  %v42 = vld [vmem:[%s2 + $0x30] sm:$0xff]
  %v43 = vld [vmem:[%s2 + $0x38] sm:$0xff]
  %v44 = vld [vmem:[%s2 + $0x40] sm:$0xff]
  %v45 = vld [vmem:[%s2 + $0x48] sm:$0xff]
  %v46 = vld [vmem:[%s2 + $0x50] sm:$0xff]
  %v47 = vld [vmem:[%s2 + $0x58] sm:$0xff]
  %v48 = vld [vmem:[%s2 + $0x60] sm:$0xff]
  %v49 = vld [vmem:[%s2 + $0x68] sm:$0xff]
  %v50 = vld [vmem:[%s2 + $0x70] sm:$0xff]
  %v51 = vld [vmem:[%s2 + $0x78] sm:$0xff]
  %v52 = vld [vmem:[%s3] sm:$0x3]
  %v53 = vld [vmem:[%s4] sm:$0x3]
  %v54 = vld [vmem:[%s0] sm:$0x3]
  %56 = vset.pattern.permute.xlu0 0
  %57 = vperm.xlu0 %56, %v20
  %v58 = vpop.permute.xlu0 %57
  %61 = vset.pattern.permute.xlu0 0
  %62 = vperm.xlu0 %61, %v21
  %v63 = vpop.permute.xlu0 %62
  %66 = vset.pattern.permute.xlu0 0
  %67 = vperm.xlu0 %66, %v22
  %v68 = vpop.permute.xlu0 %67
  %71 = vset.pattern.permute.xlu0 0
  %72 = vperm.xlu0 %71, %v23
  %v73 = vpop.permute.xlu0 %72
  %76 = vset.pattern.permute.xlu0 0
  %77 = vperm.xlu0 %76, %v24
  %v78 = vpop.permute.xlu0 %77
  %81 = vset.pattern.permute.xlu0 0
  %82 = vperm.xlu0 %81, %v25
  %v83 = vpop.permute.xlu0 %82
  %86 = vset.pattern.permute.xlu0 0
  %87 = vperm.xlu0 %86, %v26
  %v88 = vpop.permute.xlu0 %87
  %91 = vset.pattern.permute.xlu0 0
  %92 = vperm.xlu0 %91, %v27
  %v93 = vpop.permute.xlu0 %92
  %96 = vset.pattern.permute.xlu0 0
  %97 = vperm.xlu0 %96, %v28
  %v98 = vpop.permute.xlu0 %97
  %101 = vset.pattern.permute.xlu0 0
  %102 = vperm.xlu0 %101, %v29
  %v103 = vpop.permute.xlu0 %102
  %106 = vset.pattern.permute.xlu0 0
  %107 = vperm.xlu0 %106, %v30
  %v108 = vpop.permute.xlu0 %107
  %111 = vset.pattern.permute.xlu0 0
  %112 = vperm.xlu0 %111, %v31
  %v113 = vpop.permute.xlu0 %112
  %116 = vset.pattern.permute.xlu0 0
  %117 = vperm.xlu0 %116, %v32
  %v118 = vpop.permute.xlu0 %117
  %121 = vset.pattern.permute.xlu0 0
  %122 = vperm.xlu0 %121, %v33
  %v123 = vpop.permute.xlu0 %122
  %126 = vset.pattern.permute.xlu0 0
  %127 = vperm.xlu0 %126, %v34
  %v128 = vpop.permute.xlu0 %127
  %131 = vset.pattern.permute.xlu0 0
  %132 = vperm.xlu0 %131, %v35
  %v133 = vpop.permute.xlu0 %132
  %v135 = vlaneseq
  %v136 = vshrl.u32 %v135, 7
  %v137 = vsub.s32 0, %v136
  %v138 = vrot.slane %v54, %v137
  %v139 = vmul.f32 %v58, %v138
  %v140 = vmul.f32 %v63, %v138
  %v141 = vmul.f32 %v68, %v138
  %v142 = vmul.f32 %v73, %v138
  %v143 = vmul.f32 %v78, %v138
  %v144 = vmul.f32 %v83, %v138
  %v145 = vmul.f32 %v88, %v138
  %v146 = vmul.f32 %v93, %v138
  %v147 = vmul.f32 %v98, %v138
  %v148 = vmul.f32 %v103, %v138
  %v149 = vmul.f32 %v108, %v138
  %v150 = vmul.f32 %v113, %v138
  %v151 = vmul.f32 %v118, %v138
  %v152 = vmul.f32 %v123, %v138
  %v153 = vmul.f32 %v128, %v138
  %v154 = vmul.f32 %v133, %v138
  %155 = vset.pattern.permute.xlu0 1
  %156 = vperm.xlu0 %155, %v20
  %v157 = vpop.permute.xlu0 %156
  %159 = vset.pattern.permute.xlu0 1
  %160 = vperm.xlu0 %159, %v21
  %v161 = vpop.permute.xlu0 %160
  %163 = vset.pattern.permute.xlu0 1
  %164 = vperm.xlu0 %163, %v22
  %v165 = vpop.permute.xlu0 %164
  %167 = vset.pattern.permute.xlu0 1
  %168 = vperm.xlu0 %167, %v23
  %v169 = vpop.permute.xlu0 %168
  %171 = vset.pattern.permute.xlu0 1
  %172 = vperm.xlu0 %171, %v24
  %v173 = vpop.permute.xlu0 %172
  %175 = vset.pattern.permute.xlu0 1
  %176 = vperm.xlu0 %175, %v25
  %v177 = vpop.permute.xlu0 %176
  %179 = vset.pattern.permute.xlu0 1
  %180 = vperm.xlu0 %179, %v26
  %v181 = vpop.permute.xlu0 %180
  %183 = vset.pattern.permute.xlu0 1
  %184 = vperm.xlu0 %183, %v27
  %v185 = vpop.permute.xlu0 %184
  %187 = vset.pattern.permute.xlu0 1
  %188 = vperm.xlu0 %187, %v28
  %v189 = vpop.permute.xlu0 %188
  %191 = vset.pattern.permute.xlu0 1
  %192 = vperm.xlu0 %191, %v29
  %v193 = vpop.permute.xlu0 %192
  %195 = vset.pattern.permute.xlu0 1
  %196 = vperm.xlu0 %195, %v30
  %v197 = vpop.permute.xlu0 %196
  %199 = vset.pattern.permute.xlu0 1
  %200 = vperm.xlu0 %199, %v31
  %v201 = vpop.permute.xlu0 %200
  %203 = vset.pattern.permute.xlu0 1
  %204 = vperm.xlu0 %203, %v32
  %v205 = vpop.permute.xlu0 %204
  %207 = vset.pattern.permute.xlu0 1
  %208 = vperm.xlu0 %207, %v33
  %v209 = vpop.permute.xlu0 %208
  %211 = vset.pattern.permute.xlu0 1
  %212 = vperm.xlu0 %211, %v34
  %v213 = vpop.permute.xlu0 %212
  %215 = vset.pattern.permute.xlu0 1
  %216 = vperm.xlu0 %215, %v35
  %v217 = vpop.permute.xlu0 %216
  %v219 = vlaneseq
  %v220 = vshrl.u32 %v219, 7
  %v221 = vsub.s32 1, %v220
  %v222 = vrot.slane %v54, %v221
  %v223 = vmul.f32 %v157, %v222
  %v224 = vmul.f32 %v161, %v222
  %v225 = vmul.f32 %v165, %v222
  %v226 = vmul.f32 %v169, %v222
  %v227 = vmul.f32 %v173, %v222
  %v228 = vmul.f32 %v177, %v222
  %v229 = vmul.f32 %v181, %v222
  %v230 = vmul.f32 %v185, %v222
  %v231 = vmul.f32 %v189, %v222
  %v232 = vmul.f32 %v193, %v222
  %v233 = vmul.f32 %v197, %v222
  %v234 = vmul.f32 %v201, %v222
  %v235 = vmul.f32 %v205, %v222
  %v236 = vmul.f32 %v209, %v222
  %v237 = vmul.f32 %v213, %v222
  %v238 = vmul.f32 %v217, %v222
  %v239 = vadd.f32 %v139, %v223
  %v240 = vadd.f32 %v140, %v224
  %v241 = vadd.f32 %v141, %v225
  %v242 = vadd.f32 %v142, %v226
  %v243 = vadd.f32 %v143, %v227
  %v244 = vadd.f32 %v144, %v228
  %v245 = vadd.f32 %v145, %v229
  %v246 = vadd.f32 %v146, %v230
  %v247 = vadd.f32 %v147, %v231
  %v248 = vadd.f32 %v148, %v232
  %v249 = vadd.f32 %v149, %v233
  %v250 = vadd.f32 %v150, %v234
  %v251 = vadd.f32 %v151, %v235
  %v252 = vadd.f32 %v152, %v236
  %v253 = vadd.f32 %v153, %v237
  %v254 = vadd.f32 %v154, %v238
  %256 = vset.pattern.permute.xlu0 0
  %257 = vperm.xlu0 %256, %v36
  %v258 = vpop.permute.xlu0 %257
  %261 = vset.pattern.permute.xlu0 0
  %262 = vperm.xlu0 %261, %v37
  %v263 = vpop.permute.xlu0 %262
  %266 = vset.pattern.permute.xlu0 0
  %267 = vperm.xlu0 %266, %v38
  %v268 = vpop.permute.xlu0 %267
  %271 = vset.pattern.permute.xlu0 0
  %272 = vperm.xlu0 %271, %v39
  %v273 = vpop.permute.xlu0 %272
  %276 = vset.pattern.permute.xlu0 0
  %277 = vperm.xlu0 %276, %v40
  %v278 = vpop.permute.xlu0 %277
  %281 = vset.pattern.permute.xlu0 0
  %282 = vperm.xlu0 %281, %v41
  %v283 = vpop.permute.xlu0 %282
  %286 = vset.pattern.permute.xlu0 0
  %287 = vperm.xlu0 %286, %v42
  %v288 = vpop.permute.xlu0 %287
  %291 = vset.pattern.permute.xlu0 0
  %292 = vperm.xlu0 %291, %v43
  %v293 = vpop.permute.xlu0 %292
  %296 = vset.pattern.permute.xlu0 0
  %297 = vperm.xlu0 %296, %v44
  %v298 = vpop.permute.xlu0 %297
  %301 = vset.pattern.permute.xlu0 0
  %302 = vperm.xlu0 %301, %v45
  %v303 = vpop.permute.xlu0 %302
  %306 = vset.pattern.permute.xlu0 0
  %307 = vperm.xlu0 %306, %v46
  %v308 = vpop.permute.xlu0 %307
  %311 = vset.pattern.permute.xlu0 0
  %312 = vperm.xlu0 %311, %v47
  %v313 = vpop.permute.xlu0 %312
  %316 = vset.pattern.permute.xlu0 0
  %317 = vperm.xlu0 %316, %v48
  %v318 = vpop.permute.xlu0 %317
  %321 = vset.pattern.permute.xlu0 0
  %322 = vperm.xlu0 %321, %v49
  %v323 = vpop.permute.xlu0 %322
  %326 = vset.pattern.permute.xlu0 0
  %327 = vperm.xlu0 %326, %v50
  %v328 = vpop.permute.xlu0 %327
  %331 = vset.pattern.permute.xlu0 0
  %332 = vperm.xlu0 %331, %v51
  %v333 = vpop.permute.xlu0 %332
  %v335 = vadd.f32 %v239, %v258
  %v336 = vadd.f32 %v240, %v263
  %v337 = vadd.f32 %v241, %v268
  %v338 = vadd.f32 %v242, %v273
  %v339 = vadd.f32 %v243, %v278
  %v340 = vadd.f32 %v244, %v283
  %v341 = vadd.f32 %v245, %v288
  %v342 = vadd.f32 %v246, %v293
  %v343 = vadd.f32 %v247, %v298
  %v344 = vadd.f32 %v248, %v303
  %v345 = vadd.f32 %v249, %v308
  %v346 = vadd.f32 %v250, %v313
  %v347 = vadd.f32 %v251, %v318
  %v348 = vadd.f32 %v252, %v323
  %v349 = vadd.f32 %v253, %v328
  %v350 = vadd.f32 %v254, %v333
  %v351 = vmax.f32 %v335, 0.0
  %v352 = vmax.f32 %v336, 0.0
  %v353 = vmax.f32 %v337, 0.0
  %v354 = vmax.f32 %v338, 0.0
  %v355 = vmax.f32 %v339, 0.0
  %v356 = vmax.f32 %v340, 0.0
  %v357 = vmax.f32 %v341, 0.0
  %v358 = vmax.f32 %v342, 0.0
  %v359 = vmax.f32 %v343, 0.0
  %v360 = vmax.f32 %v344, 0.0
  %v361 = vmax.f32 %v345, 0.0
  %v362 = vmax.f32 %v346, 0.0
  %v363 = vmax.f32 %v347, 0.0
  %v364 = vmax.f32 %v348, 0.0
  %v365 = vmax.f32 %v349, 0.0
  %v366 = vmax.f32 %v350, 0.0
  %368 = vset.pattern.permute.xlu0 0
  %369 = vperm.xlu0 %368, %v53
  %v370 = vpop.permute.xlu0 %369
  %372 = vmatprep.subr.mxu0 0.0
  %373 = vmatpush1.msra.mxu0 %v351
  %374 = vmatprep.subr.mxu0 0.0
  %375 = vmatpush1.msra.mxu0 %v352
  %376 = vmatprep.subr.mxu0 0.0
  %377 = vmatpush1.msra.mxu0 %v353
  %378 = vmatprep.subr.mxu0 0.0
  %379 = vmatpush1.msra.mxu0 %v354
  %380 = vmatprep.subr.mxu0 0.0
  %381 = vmatpush1.msra.mxu0 %v355
  %382 = vmatprep.subr.mxu0 0.0
  %383 = vmatpush1.msra.mxu0 %v356
  %384 = vmatprep.subr.mxu0 0.0
  %385 = vmatpush1.msra.mxu0 %v357
  %386 = vmatprep.subr.mxu0 0.0
  %387 = vmatpush1.msra.mxu0 %v358
  %388 = vmatprep.subr.mxu0 0.0
  %389 = vmatpush1.msra.mxu0 %v359
  %390 = vmatprep.subr.mxu0 0.0
  %391 = vmatpush1.msra.mxu0 %v360
  %392 = vmatprep.subr.mxu0 0.0
  %393 = vmatpush1.msra.mxu0 %v361
  %394 = vmatprep.subr.mxu0 0.0
  %395 = vmatpush1.msra.mxu0 %v362
  %396 = vmatprep.subr.mxu0 0.0
  %397 = vmatpush1.msra.mxu0 %v363
  %398 = vmatprep.subr.mxu0 0.0
  %399 = vmatpush1.msra.mxu0 %v364
  %400 = vmatprep.subr.mxu0 0.0
  %401 = vmatpush1.msra.mxu0 %v365
  %402 = vmatprep.subr.mxu0 0.0
  %403 = vmatpush1.msra.mxu0 %v366
  %404 = vmatprep.subr.mxu0 0.0
  %405 = vmatpush1.msra.mxu0 0.0
  %406 = vmatprep.subr.mxu0 0.0
  %407 = vmatpush1.msra.mxu0 0.0
  %408 = vmatprep.subr.mxu0 0.0
  %409 = vmatpush1.msra.mxu0 0.0
  %410 = vmatprep.subr.mxu0 0.0
  %411 = vmatpush1.msra.mxu0 0.0
  %412 = vmatprep.subr.mxu0 0.0
  %413 = vmatpush1.msra.mxu0 0.0
  %414 = vmatprep.subr.mxu0 0.0
  %415 = vmatpush1.msra.mxu0 0.0
  %416 = vmatprep.subr.mxu0 0.0
  %417 = vmatpush1.msra.mxu0 0.0
  %418 = vmatprep.subr.mxu0 0.0
  %419 = vmatpush1.msra.mxu0 0.0
  %420 = vmatprep.subr.mxu0 0.0
  %421 = vmatpush1.msra.mxu0 0.0
  %422 = vmatprep.subr.mxu0 0.0
  %423 = vmatpush1.msra.mxu0 0.0
  %424 = vmatprep.subr.mxu0 0.0
  %425 = vmatpush1.msra.mxu0 0.0
  %426 = vmatprep.subr.mxu0 0.0
  %427 = vmatpush1.msra.mxu0 0.0
  %428 = vmatprep.subr.mxu0 0.0
  %429 = vmatpush1.msra.mxu0 0.0
  %430 = vmatprep.subr.mxu0 0.0
  %431 = vmatpush1.msra.mxu0 0.0
  %432 = vmatprep.subr.mxu0 0.0
  %433 = vmatpush1.msra.mxu0 0.0
  %434 = vmatprep.subr.mxu0 0.0
  %435 = vmatpush1.msra.mxu0 0.0
  %436 = vmatprep.mubr.f32.mxu0 0.0
  %437 = vmatmul.mubr.f32.gmra.mrb[0].mxu0 %v52
  %v438 = vpop.f32.mrb[0].mxu0
  %v439 = vadd.f32 %v370, %v438
  %v440 = vpop.f32.mrb[0].mxu0
  %441 = vdwg.mxu0
  %442 = vst [vmem:[%s5] sm:$0x3] %v439
  // Predicated region
  $region22: #{generator_forward.1} parent=0 // pred_check
    _
  $region23: #{generator_forward.1} parent=0 // pred_check_branch
    %444 = sbr.rel (0) target = $region25
  $region24: #{generator_forward.1} parent=0 // pred_region
    _
  $region25: #{generator_forward.1} parent=0 // pred_fallthru
    _
  // Predicated region
  $region26: #{generator_forward.1} parent=0 // pred_check
    _
  $region27: #{generator_forward.1} parent=0 // pred_check_branch
    %446 = sbr.rel (0) target = $region29
  $region28: #{generator_forward.1} parent=0 // pred_region
    _
  $region29: #{generator_forward.1} parent=0 // pred_fallthru
    _

</llo_original>
